<compile_context>
chip_gen: v6e
topology: v6e:2x2x1
jax: 0.10.0
libtpu: 0.0.40
codegen_flags: <defaults>
</compile_context>

<pallas_src>
import functools
import math

import jax
import jax.numpy as jnp
from jax.experimental import pallas as pl
from jax.experimental.pallas import tpu as pltpu

LANE = 128
# 4096 rows * 128 lanes * 4 B = 2 MiB of f32 per input block.  Two inputs,
# double-buffered by the BlockSpec pipeline -> ~8 MiB of VMEM, comfortably
# under the default scoped-VMEM limit on v5e/v6e/v7x (accumulators are tiny).
MAX_BLOCK_ROWS = 4096


def _dice_kernel(x_ref, t_ref, out_ref, inter_acc, denom_acc, *,
                 smooth, from_logits, n_valid, block_rows, needs_mask):
    i = pl.program_id(0)

    @pl.when(i == 0)
    def _init():
        inter_acc[...] = jnp.zeros_like(inter_acc)
        denom_acc[...] = jnp.zeros_like(denom_acc)

    x = x_ref[...].astype(jnp.float32)
    t = t_ref[...].astype(jnp.float32)

    if from_logits:
        # F.logsigmoid(x).exp() == sigmoid(x); EUP op, hidden under the DMA.
        x = jax.nn.sigmoid(x)

    if needs_mask:
        # Mask the ragged tail: lane padding added by the wrapper and/or the
        # partial last grid block (whose out-of-bounds rows hold unspecified
        # data).  Static flag -> zero cost for lane/block-aligned inputs.
        # Applied AFTER the sigmoid so masked positions contribute exactly 0.
        row = jax.lax.broadcasted_iota(jnp.int32, x.shape, 0)
        lane = jax.lax.broadcasted_iota(jnp.int32, x.shape, 1)
        flat = (i * block_rows + row) * LANE + lane
        valid = flat < n_valid
        x = jnp.where(valid, x, 0.0)
        t = jnp.where(valid, t, 0.0)

    # Per-step partial reduction over the sublane axis only (vreg-wise VPU
    # adds plus one tiny sublane fold, no cross-lane XLU traffic); the
    # (1, 128) accumulators stay vreg-sized regardless of the streaming block
    # size.
    inter_acc[...] += jnp.sum(x * t, axis=0, keepdims=True)   # -> sum(p * t)
    denom_acc[...] += jnp.sum(x + t, axis=0, keepdims=True)   # -> sum(p) + sum(t)

    @pl.when(i == pl.num_programs(0) - 1)
    def _finalize():
        inter = jnp.sum(inter_acc[...])    # single cross-lane reduce at the end
        denom = jnp.sum(denom_acc[...])
        out_ref[0] = jnp.float32(1.0) - (
            jnp.float32(2.0) * inter + jnp.float32(smooth)
        ) / (denom + jnp.float32(smooth))


def dice_loss(logits, target, smooth=1.0, from_logits=True):
    n = math.prod(logits.shape)
    xf = logits.reshape(-1)    # native dtype; cast happens inside the kernel
    tf = target.reshape(-1)

    # Only pad when the element count is not lane-aligned.  Pad values are
    # masked inside the kernel, so zero padding is safe for any dtype.
    pad = (-n) % LANE
    if pad:
        xf = jnp.pad(xf, (0, pad))
        tf = jnp.pad(tf, (0, pad))
    rows = (n + pad) // LANE

    if rows <= MAX_BLOCK_ROWS:
        block_rows = rows          # one full-array block (grid = (1,))
    else:
        block_rows = MAX_BLOCK_ROWS
    grid = (pl.cdiv(rows, block_rows),)
    needs_mask = (pad != 0) or (rows % block_rows != 0)

    x2 = xf.reshape(rows, LANE)
    t2 = tf.reshape(rows, LANE)

    kernel = functools.partial(
        _dice_kernel,
        smooth=float(smooth),
        from_logits=bool(from_logits),
        n_valid=n,
        block_rows=block_rows,
        needs_mask=needs_mask,
    )

    out = pl.pallas_call(
        kernel,
        out_shape=jax.ShapeDtypeStruct((1,), jnp.float32),
        grid_spec=pltpu.PrefetchScalarGridSpec(
            num_scalar_prefetch=0,
            grid=grid,
            in_specs=[
                pl.BlockSpec((block_rows, LANE), lambda i: (i, 0)),
                pl.BlockSpec((block_rows, LANE), lambda i: (i, 0)),
            ],
            out_specs=pl.BlockSpec(memory_space=pltpu.SMEM),
            scratch_shapes=[
                pltpu.VMEM((1, LANE), jnp.float32),  # inter accumulator
                pltpu.VMEM((1, LANE), jnp.float32),  # denom accumulator
            ],
        ),
        compiler_params=pltpu.CompilerParams(
            dimension_semantics=("arbitrary",),   # sequential accumulation
        ),
    )(x2, t2)
    return out[0]


def dice_loss_ref(logits, target, smooth=1.0, from_logits=True):
    x = logits.astype(jnp.float32)
    t = target.astype(jnp.float32)
    if from_logits:
        x = jnp.exp(jax.nn.log_sigmoid(x))
    iflat = x.reshape(-1)
    tflat = t.reshape(-1)
    inter = jnp.sum(iflat * tflat)
    return 1.0 - (2.0 * inter + smooth) / (jnp.sum(iflat) + jnp.sum(tflat) + smooth)


if __name__ == "__main__":
    key = jax.random.PRNGKey(0)
    k1, k2 = jax.random.split(key)
    # NCHW, like the PyTorch module would see from a conv head.
    x = jax.random.normal(k1, (2, 4, 16, 16), dtype=jnp.float32)
    target = (jax.random.uniform(k2, (2, 4, 16, 16)) > 0.5).astype(jnp.float32)

    loss = dice_loss(x, target, smooth=1.0, from_logits=True)
    loss = jax.block_until_ready(loss)

    ref = dice_loss_ref(x, target, smooth=1.0, from_logits=True)
    assert jnp.allclose(loss, ref, atol=1e-5, rtol=1e-5), (loss, ref)

    print("KERNEL_OK")
</pallas_src>

<mosaic_0001>
module attributes {stable_mosaic.version = 11 : i64} {
  func.func @_dice_kernel(%arg0: i32, %arg1: memref<16x128xf32, #tpu.memory_space<vmem>>, %arg2: memref<16x128xf32, #tpu.memory_space<vmem>>, %arg3: memref<1xf32, #tpu.memory_space<smem>>, %arg4: memref<1x128xf32, #tpu.memory_space<vmem>>, %arg5: memref<1x128xf32, #tpu.memory_space<vmem>>) attributes {dimension_semantics = [#tpu.dimension_semantics<arbitrary>], iteration_bounds = array<i64: 1>, scalar_prefetch = 0 : i64, scratch_operands = 2 : i64, tpu.core_type = #tpu.core_type<tc>, window_params = [{transform_indices = @transform_0, window_bounds = array<i64: 16, 128>}, {transform_indices = @transform_1, window_bounds = array<i64: 16, 128>}, {transform_indices = @transform_2, window_bounds = array<i64: 1>}]} {
    %c0_i32 = arith.constant 0 : i32
    %0 = arith.cmpi eq, %arg0, %c0_i32 : i32
    %1 = arith.extui %0 : i1 to i32
    %c0_i32_0 = arith.constant 0 : i32
    %2 = arith.cmpi ne, %1, %c0_i32_0 : i32
    scf.if %2 {
      %cst_16 = arith.constant 0.000000e+00 : f32
      %25 = vector.broadcast %cst_16 : f32 to vector<1x128xf32>
      %c0_17 = arith.constant 0 : index
      %c0_18 = arith.constant 0 : index
      %26 = vector.load %arg4[%c0_17, %c0_18] : memref<1x128xf32, #tpu.memory_space<vmem>>, vector<1x128xf32>
      tpu.vector_store %arg4[%c0_17, %c0_18], %25 {strides = array<i32>} : memref<1x128xf32, #tpu.memory_space<vmem>>, vector<1x128xf32>,
      %cst_19 = arith.constant 0.000000e+00 : f32
      %27 = vector.broadcast %cst_19 : f32 to vector<1x128xf32>
      %c0_20 = arith.constant 0 : index
      %c0_21 = arith.constant 0 : index
      %28 = vector.load %arg5[%c0_20, %c0_21] : memref<1x128xf32, #tpu.memory_space<vmem>>, vector<1x128xf32>
      tpu.vector_store %arg5[%c0_20, %c0_21], %27 {strides = array<i32>} : memref<1x128xf32, #tpu.memory_space<vmem>>, vector<1x128xf32>,
    } else {
    }
    %c0 = arith.constant 0 : index
    %c0_1 = arith.constant 0 : index
    %3 = vector.load %arg1[%c0, %c0_1] : memref<16x128xf32, #tpu.memory_space<vmem>>, vector<16x128xf32>
    %c0_2 = arith.constant 0 : index
    %c0_3 = arith.constant 0 : index
    %4 = vector.load %arg2[%c0_2, %c0_3] : memref<16x128xf32, #tpu.memory_space<vmem>>, vector<16x128xf32>
    %5 = arith.negf %3 : vector<16x128xf32>
    %6 = math.exp %5 : vector<16x128xf32>
    %cst = arith.constant 1.000000e+00 : f32
    %7 = vector.broadcast %cst : f32 to vector<16x128xf32>
    %8 = arith.addf %7, %6 : vector<16x128xf32>
    %9 = arith.divf %7, %8 : vector<16x128xf32>
    %c0_4 = arith.constant 0 : index
    %c0_5 = arith.constant 0 : index
    %10 = vector.load %arg4[%c0_4, %c0_5] : memref<1x128xf32, #tpu.memory_space<vmem>>, vector<1x128xf32>
    %11 = arith.mulf %9, %4 : vector<16x128xf32>
    %cst_6 = arith.constant dense<0.000000e+00> : vector<128xf32>
    %12 = vector.multi_reduction <add>, %11, %cst_6 [0] : vector<16x128xf32> to vector<128xf32>
    %13 = vector.shape_cast %12 : vector<128xf32> to vector<1x128xf32>
    %14 = arith.addf %10, %13 : vector<1x128xf32>
    %c0_7 = arith.constant 0 : index
    %c0_8 = arith.constant 0 : index
    %15 = vector.load %arg4[%c0_7, %c0_8] : memref<1x128xf32, #tpu.memory_space<vmem>>, vector<1x128xf32>
    tpu.vector_store %arg4[%c0_7, %c0_8], %14 {strides = array<i32>} : memref<1x128xf32, #tpu.memory_space<vmem>>, vector<1x128xf32>,
    %c0_9 = arith.constant 0 : index
    %c0_10 = arith.constant 0 : index
    %16 = vector.load %arg5[%c0_9, %c0_10] : memref<1x128xf32, #tpu.memory_space<vmem>>, vector<1x128xf32>
    %17 = arith.addf %9, %4 : vector<16x128xf32>
    %cst_11 = arith.constant dense<0.000000e+00> : vector<128xf32>
    %18 = vector.multi_reduction <add>, %17, %cst_11 [0] : vector<16x128xf32> to vector<128xf32>
    %19 = vector.shape_cast %18 : vector<128xf32> to vector<1x128xf32>
    %20 = arith.addf %16, %19 : vector<1x128xf32>
    %c0_12 = arith.constant 0 : index
    %c0_13 = arith.constant 0 : index
    %21 = vector.load %arg5[%c0_12, %c0_13] : memref<1x128xf32, #tpu.memory_space<vmem>>, vector<1x128xf32>
    tpu.vector_store %arg5[%c0_12, %c0_13], %20 {strides = array<i32>} : memref<1x128xf32, #tpu.memory_space<vmem>>, vector<1x128xf32>,
    %c0_i32_14 = arith.constant 0 : i32
    %22 = arith.cmpi eq, %arg0, %c0_i32_14 : i32
    %23 = arith.extui %22 : i1 to i32
    %c0_i32_15 = arith.constant 0 : i32
    %24 = arith.cmpi ne, %23, %c0_i32_15 : i32
    scf.if %24 {
      %c0_16 = arith.constant 0 : index
      %c0_17 = arith.constant 0 : index
      %25 = vector.load %arg4[%c0_16, %c0_17] : memref<1x128xf32, #tpu.memory_space<vmem>>, vector<1x128xf32>
      %26 = vector.shape_cast %25 : vector<1x128xf32> to vector<1x1x128xf32>
      %cst_18 = arith.constant dense<0.000000e+00> : vector<1xf32>
      %27 = vector.multi_reduction <add>, %26, %cst_18 [1, 2] : vector<1x1x128xf32> to vector<1xf32>
      %28 = vector.shape_cast %27 : vector<1xf32> to vector<1x1x1xf32>
      %29 = vector.extract %28[0, 0, 0] : f32 from vector<1x1x1xf32>
      %c0_19 = arith.constant 0 : index
      %c0_20 = arith.constant 0 : index
      %30 = vector.load %arg5[%c0_19, %c0_20] : memref<1x128xf32, #tpu.memory_space<vmem>>, vector<1x128xf32>
      %31 = vector.shape_cast %30 : vector<1x128xf32> to vector<1x1x128xf32>
      %cst_21 = arith.constant dense<0.000000e+00> : vector<1xf32>
      %32 = vector.multi_reduction <add>, %31, %cst_21 [1, 2] : vector<1x1x128xf32> to vector<1xf32>
      %33 = vector.shape_cast %32 : vector<1xf32> to vector<1x1x1xf32>
      %34 = vector.extract %33[0, 0, 0] : f32 from vector<1x1x1xf32>
      %cst_22 = arith.constant 2.000000e+00 : f32
      %35 = arith.mulf %cst_22, %29 : f32
      %cst_23 = arith.constant 1.000000e+00 : f32
      %36 = arith.addf %35, %cst_23 : f32
      %cst_24 = arith.constant 1.000000e+00 : f32
      %37 = arith.addf %34, %cst_24 : f32
      %38 = arith.divf %36, %37 : f32
      %cst_25 = arith.constant 1.000000e+00 : f32
      %39 = arith.subf %cst_25, %38 : f32
      %c0_26 = arith.constant 0 : index
      %40 = memref.load %arg3[%c0_26] : memref<1xf32, #tpu.memory_space<smem>>
      memref.store %39, %arg3[%c0_26] : memref<1xf32, #tpu.memory_space<smem>>
    } else {
    }
    return
  }
  func.func @transform_0(%arg0: i32) -> (i32, i32) {
    %c0_i32 = arith.constant 0 : i32
    %c0_i32_0 = arith.constant 0 : i32
    return %arg0, %c0_i32 : i32, i32
  }
  func.func @transform_1(%arg0: i32) -> (i32, i32) {
    %c0_i32 = arith.constant 0 : i32
    %c0_i32_0 = arith.constant 0 : i32
    return %arg0, %c0_i32 : i32, i32
  }
  func.func @transform_2(%arg0: i32) -> i32 {
    %c0_i32 = arith.constant 0 : i32
    %c0_i32_0 = arith.constant 0 : i32
    return %c0_i32 : i32
  }
}

</mosaic_0001>

<llo_original>
// kernel: tpu_custom_call.1
$region0: #{tpu_custom_call.1}
  #allocation0 [shape = 'u32[]', space=smem, size = 0x4, offset = 0x4, fixed_abs, tag = 'smem constant byte address 0x4 - core index']
  #allocation1 [shape = 'u32[144,128]{1,0:T(1,128)}', space=vmem, size = 0x12000, scoped, tag = 'internal scratch']
  #allocation2 [shape = 'f32[1,128]{1,0:T(1,128)}', space=vmem, size = 0x200, scoped, tag = 'scratch operand']
  #allocation3 [shape = 'f32[1,128]{1,0:T(1,128)}', space=vmem, size = 0x200, scoped, tag = 'scratch operand']
  %s0 = inlined_call_operand.hbm [shape: f32[16,128], index: 0, kind: input, shape index: {}]
  %s1 = inlined_call_operand.hbm [shape: f32[16,128], index: 1, kind: input, shape index: {}]
  %s2 = inlined_call_operand.hbm [shape: f32[1], index: 2, kind: output, shape index: {}]
  %s3 = sld [smem:[#allocation0]]
  $region34: #{tpu_custom_call.1} parent=0
    _
  %s5 = ssub.s32 1, %s3
  %s6 = scalar_select 0, %s5, %s3
  $region1: #{tpu_custom_call.1} parent=0
    #allocation4 [shape = 'u8[8192]{0}', space=vmem, size = 0x2000, scoped, tag = 'input window, operand 0, single buffered']
    #allocation5 [shape = 's32[1]{0}', space=sflag, size = 0x4, scoped, tag = 'scoped memory for tpu_custom_call.1']
    #allocation6 [shape = 's32[1]{0}', space=sflag, size = 0x4, scoped, tag = 'scoped memory for tpu_custom_call.1']
    #allocation7 [shape = 'u8[8192]{0}', space=vmem, size = 0x2000, scoped, tag = 'input window, operand 1, single buffered']
    #allocation8 [shape = 's32[1]{0}', space=sflag, size = 0x4, scoped, tag = 'scoped memory for tpu_custom_call.1']
    #allocation9 [shape = 'u8[512]{0}', space=smem, size = 0x200, scoped, tag = 'output window, operand 0, single buffered']
    %7 = vsyncpa [#allocation5], 0
    %8 = vsyncpa [#allocation8], 0
    %9 = vsyncpa [#allocation6], 0
    // Predicated region
    $region2: #{tpu_custom_call.1} parent=1 // pred_check
      _
    $region3: #{tpu_custom_call.1} parent=1 // pred_check_branch
      %11 = sbr.rel (0) target = $region5
    $region4: #{tpu_custom_call.1} parent=1 // pred_region
      %s13 = ssub.s32 256, 256
      %14 = vsyncadd [#allocation5], %s13
      %s15 = sshll.u32 [#allocation4], 4
      %s16 = int_to_ptr.vmem [resolvable:$true] %s15
      %21 = dma.hbm_to_vmem [thread:$0]  %s0, 256, %s16, [#allocation5], 128, 128, 8
    $region5: #{tpu_custom_call.1} parent=1 // pred_fallthru
      _
    // Predicated region
    $region6: #{tpu_custom_call.1} parent=1 // pred_check
      _
    $region7: #{tpu_custom_call.1} parent=1 // pred_check_branch
      %23 = sbr.rel (0) target = $region9
    $region8: #{tpu_custom_call.1} parent=1 // pred_region
      %s25 = ssub.s32 256, 256
      %26 = vsyncadd [#allocation8], %s25
      %s27 = sshll.u32 [#allocation7], 4
      %s28 = int_to_ptr.vmem [resolvable:$true] %s27
      %33 = dma.hbm_to_vmem [thread:$0]  %s1, 256, %s28, [#allocation8], 128, 128, 8
    $region9: #{tpu_custom_call.1} parent=1 // pred_fallthru
      _
    // Predicated region
    $region10: #{tpu_custom_call.1} parent=1 // pred_check
      _
    $region11: #{tpu_custom_call.1} parent=1 // pred_check_branch
      %35 = sbr.rel (0) target = $region13
    $region12: #{tpu_custom_call.1} parent=1 // pred_region
      %36 = dma.done [#allocation5], 256
    $region13: #{tpu_custom_call.1} parent=1 // pred_fallthru
      _
    // Predicated region
    $region14: #{tpu_custom_call.1} parent=1 // pred_check
      _
    $region15: #{tpu_custom_call.1} parent=1 // pred_check_branch
      %38 = sbr.rel (0) target = $region17
    $region16: #{tpu_custom_call.1} parent=1 // pred_region
      %39 = dma.done [#allocation8], 256
    $region17: #{tpu_custom_call.1} parent=1 // pred_fallthru
      _
    %p40 = scmp.eq.s32.totalorder 0, 0
    // Predicated region
    $region18: #{tpu_custom_call.1} parent=1 // pred_check
      %p41 = pneg %p40
    $region19: #{tpu_custom_call.1} parent=1 // pred_check_branch
      %43 = sbr.rel (%p41) target = $region21
    $region20: #{tpu_custom_call.1} parent=1 // pred_region
      %44 = vst [vmem:[#allocation2] sm:$0x1] 0.0
      %45 = vst [vmem:[#allocation3] sm:$0x1] 0.0
    $region21: #{tpu_custom_call.1} parent=1 // pred_fallthru
      _
    %v46 = vld [vmem:[#allocation4] sm:$0xff]
    %v47 = vld [vmem:[#allocation4 + $0x8] sm:$0xff]
    %v48 = vld [vmem:[#allocation7] sm:$0xff]
    %v49 = vld [vmem:[#allocation7 + $0x8] sm:$0xff]
    %v50 = vxor.u32 %v46, 2147483648
    %v51 = vxor.u32 %v47, 2147483648
    %v52 = vmul.f32 %v50, 1.442695
    %v53 = vpow.pop %v52
    %v54 = vmul.f32 %v51, 1.442695
    %v55 = vpow.pop %v54
    %v56 = vadd.f32 %v53, 1.0
    %v57 = vadd.f32 %v55, 1.0
    %v58 = vrcp.pop %v56
    %v59 = vmul.f32 1.0, %v58
    %v60 = vrcp.pop %v57
    %v61 = vmul.f32 1.0, %v60
    %v62 = vld [vmem:[#allocation2] sm:$0x1]
    %v63 = vmul.f32 %v59, %v48
    %v64 = vmul.f32 %v61, %v49
    %v65 = vadd.f32 %v63, %v64
    %v66 = vrot.slane %v65, 4
    %v67 = vadd.f32 %v65, %v66
    %v68 = vrot.slane %v67, 2
    %v69 = vadd.f32 %v67, %v68
    %v70 = vrot.slane %v69, 1
    %v71 = vadd.f32 %v69, %v70
    %v72 = vadd.f32 %v62, %v71
    %73 = vst [vmem:[#allocation2] sm:$0x1] %v72
    %v74 = vld [vmem:[#allocation3] sm:$0x1]
    %v75 = vadd.f32 %v59, %v48
    %v76 = vadd.f32 %v61, %v49
    %v77 = vadd.f32 %v75, %v76
    %v78 = vrot.slane %v77, 4
    %v79 = vadd.f32 %v77, %v78
    %v80 = vrot.slane %v79, 2
    %v81 = vadd.f32 %v79, %v80
    %v82 = vrot.slane %v81, 1
    %v83 = vadd.f32 %v81, %v82
    %v84 = vadd.f32 %v74, %v83
    %85 = vst [vmem:[#allocation3] sm:$0x1] %v84
    // Predicated region
    $region22: #{tpu_custom_call.1} parent=1 // pred_check
      %p86 = pneg %p40
    $region23: #{tpu_custom_call.1} parent=1 // pred_check_branch
      %88 = sbr.rel (%p86) target = $region25
    $region24: #{tpu_custom_call.1} parent=1 // pred_region
      %v89 = vld [vmem:[#allocation2] sm:$0x1]
      %vm90 = vcmask 1040384
      %v91 = vsel %vm90, %v89, 0.0
      %92 = vadd.xlane.f32.xlu0 %v91
      %v93 = vpop.xlane.xlu0 %92
      %v94 = vrot.slane %v93, 4
      %v95 = vadd.f32 %v93, %v94
      %v96 = vrot.slane %v95, 2
      %v97 = vadd.f32 %v95, %v96
      %v98 = vrot.slane %v97, 1
      %v99 = vadd.f32 %v97, %v98
      %s100 = vtos %v99
      %v101 = vld [vmem:[#allocation3] sm:$0x1]
      %v102 = vsel %vm90, %v101, 0.0
      %103 = vadd.xlane.f32.xlu0 %v102
      %v104 = vpop.xlane.xlu0 %103
      %v105 = vrot.slane %v104, 4
      %v106 = vadd.f32 %v104, %v105
      %v107 = vrot.slane %v106, 2
      %v108 = vadd.f32 %v106, %v107
      %v109 = vrot.slane %v108, 1
      %v110 = vadd.f32 %v108, %v109
      %s111 = vtos %v110
      %s112 = smul.f32 %s100, 2.0
      %s113 = sadd.f32 %s112, 1.0
      %s114 = sadd.f32 %s111, 1.0
      %v115 = vstv %s114
      %v116 = vrcp.pop %v115
      %s117 = vtos %v116
      %s118 = smul.f32 %s113, %s117
      %s119 = ssub.f32 1.0, %s118
      %s120 = scalar_lea.smem [#allocation9], 0
      %121 = sst [smem:[%s120]] %s119
    $region25: #{tpu_custom_call.1} parent=1 // pred_fallthru
      _
    // Predicated region
    $region26: #{tpu_custom_call.1} parent=1 // pred_check
      _
    $region27: #{tpu_custom_call.1} parent=1 // pred_check_branch
      %123 = sbr.rel (0) target = $region29
    $region28: #{tpu_custom_call.1} parent=1 // pred_region
      %s125 = ssub.s32 16, 16
      %126 = vsyncadd [#allocation6], %s125
      %129 = dma.smem_to_hbm [#allocation9], 16, %s2, [#allocation6]
    $region29: #{tpu_custom_call.1} parent=1 // pred_fallthru
      _
    // Predicated region
    $region30: #{tpu_custom_call.1} parent=1 // pred_check
      _
    $region31: #{tpu_custom_call.1} parent=1 // pred_check_branch
      %131 = sbr.rel (0) target = $region33
    $region32: #{tpu_custom_call.1} parent=1 // pred_region
      %132 = dma.done [#allocation6], 16
    $region33: #{tpu_custom_call.1} parent=1 // pred_fallthru
      _
    %133 = sfence
    %134 = vsyncpa [#allocation5], 1
    %135 = vsyncpa [#allocation8], 1
    %136 = vsyncpa [#allocation6], 1

</llo_original>
